<compile_context>
chip_gen: v7x
topology: tpu7x:2x2x1
jax: 0.10.0
libtpu: 0.0.40
codegen_flags: <defaults>
</compile_context>

<pallas_src>
import functools

import jax
import jax.numpy as jnp
from jax import lax
from jax.experimental import pallas as pl
from jax.experimental.pallas import tpu as pltpu


def _fused_block_kernel(x_ref, w1_ref, s1_ref, b1_ref, w2_ref, s2_ref, b2_ref,
                        o_ref, xrows_ref, yrows_ref):
    """Fused (conv3x3 + BN + ReLU) x2 for one batch element, lane-dense slabs.

    x_ref:     (1, H, W*Cin)         input slab (NHWC flattened along lanes)
    w1_ref:    (3, W*Cin, W*Cout)    banded conv1 weights, one matrix per dy tap
    s1_ref:    (1, W*Cout)           folded BN1 scale, tiled W times
    b1_ref:    (1, W*Cout)           folded BN1 bias,  tiled W times
    w2_ref:    (3, W*Cout, W*Cout)   banded conv2 weights
    s2_ref:    (1, W*Cout)           folded BN2 scale
    b2_ref:    (1, W*Cout)           folded BN2 bias
    o_ref:     (1, H, W*Cout)        output slab
    xrows_ref: (H+2, W*Cin)   VMEM   conv1 input with zero 1-row height halo
    yrows_ref: (H+2, W*Cout)  VMEM   intermediate activation (never hits HBM)
    """
    H = o_ref.shape[1]
    WCout = o_ref.shape[2]

    # --- stage conv1 input with a zero 1-row height halo (the width halo is
    #     already folded into the banded weight matrices -> no jnp.pad) -------
    zx = jnp.zeros((1, xrows_ref.shape[1]), xrows_ref.dtype)
    xrows_ref[0:1, :] = zx
    xrows_ref[H + 1:H + 2, :] = zx
    xrows_ref[1:H + 1, :] = x_ref[0].astype(xrows_ref.dtype)

    # --- conv1: 3 row-shifted matmuls, K = W*Cin, N = W*Cout (lane dense) ----
    acc = jnp.zeros((H, WCout), jnp.float32)
    for dy in range(3):                      # static, unrolled at trace time
        acc = acc + jnp.dot(xrows_ref[dy:dy + H, :], w1_ref[dy],
                            preferred_element_type=jnp.float32)
    y1 = jnp.maximum(acc * s1_ref[...] + b1_ref[...], 0.0)     # BN1 + ReLU

    # --- intermediate stays in VMEM scratch --------------------------------
    zy = jnp.zeros((1, yrows_ref.shape[1]), yrows_ref.dtype)
    yrows_ref[0:1, :] = zy
    yrows_ref[H + 1:H + 2, :] = zy
    yrows_ref[1:H + 1, :] = y1.astype(yrows_ref.dtype)

    # --- conv2: 3 row-shifted matmuls, K = N = W*Cout -----------------------
    acc2 = jnp.zeros((H, WCout), jnp.float32)
    for dy in range(3):
        acc2 = acc2 + jnp.dot(yrows_ref[dy:dy + H, :], w2_ref[dy],
                              preferred_element_type=jnp.float32)
    out = jnp.maximum(acc2 * s2_ref[...] + b2_ref[...], 0.0)   # BN2 + ReLU

    o_ref[0] = out.astype(o_ref.dtype)       # full-lane-width unmasked store


def _build_banded_weights(w_hwio, W, dtype):
    """(3, 3, Cin, Cout) -> (3, W*Cin, W*Cout) block-banded matrices.

    banded[dy][wi*Cin + ci, wo*Cout + co] = w[dy, wi - wo + 1, ci, co]
    (zero when wi - wo + 1 is outside [0, 3)).  This folds the three dx taps
    and the SAME padding along W into a single matmul per dy tap.
    """
    _, _, Cin, Cout = w_hwio.shape
    wi = jnp.arange(W)[:, None]
    wo = jnp.arange(W)[None, :]
    dx = wi - wo + 1                                        # (W, W)
    valid = ((dx >= 0) & (dx < 3)).astype(w_hwio.dtype)
    blocks = w_hwio[:, jnp.clip(dx, 0, 2)]                  # (3, W, W, Cin, Cout)
    blocks = blocks * valid[None, :, :, None, None]
    # (dy, wi, wo, ci, co) -> (dy, wi, ci, wo, co) -> (dy, W*Cin, W*Cout)
    return blocks.transpose(0, 1, 3, 2, 4).reshape(3, W * Cin, W * Cout).astype(dtype)


def bottleneck2conv_pallas(x_slab, w1b, s1t, b1t, w2b, s2t, b2t, *, H, W, Cout):
    """x_slab: (N, H, W*Cin) lane-dense activation slab."""
    N = x_slab.shape[0]
    WCin = x_slab.shape[2]
    WCout = W * Cout
    cdt = w1b.dtype

    return pl.pallas_call(
        _fused_block_kernel,
        out_shape=jax.ShapeDtypeStruct((N, H, WCout), x_slab.dtype),
        grid=(N,),
        in_specs=[
            pl.BlockSpec((1, H, WCin), lambda n: (n, 0, 0)),
            pl.BlockSpec((3, WCin, WCout), lambda n: (0, 0, 0)),
            pl.BlockSpec((1, WCout), lambda n: (0, 0)),
            pl.BlockSpec((1, WCout), lambda n: (0, 0)),
            pl.BlockSpec((3, WCout, WCout), lambda n: (0, 0, 0)),
            pl.BlockSpec((1, WCout), lambda n: (0, 0)),
            pl.BlockSpec((1, WCout), lambda n: (0, 0)),
        ],
        out_specs=pl.BlockSpec((1, H, WCout), lambda n: (n, 0, 0)),
        scratch_shapes=[
            pltpu.VMEM((H + 2, WCin), cdt),     # conv1 input + height halo
            pltpu.VMEM((H + 2, WCout), cdt),    # intermediate activation
        ],
        compiler_params=pltpu.CompilerParams(
            dimension_semantics=("parallel",),      # batch shards across TCs (v7x)
            vmem_limit_bytes=32 * 1024 * 1024,
        ),
    )(x_slab, w1b, s1t, b1t, w2b, s2t, b2t)


@functools.partial(jax.jit, static_argnames=("compute_dtype",))
def bottleneck2conv_forward(x_nchw, w1, s1, b1, w2, s2, b2,
                            compute_dtype=jnp.float32):
    """Matches the PyTorch module: NCHW f32 in / NCHW f32 out, eval-mode BN."""
    N, Cin, H, W = x_nchw.shape
    Cout = w1.shape[-1]

    # NCHW -> lane-dense (N, H, W*Cin).  NOTE: in a full NHWC-resident network
    # these boundary transposes disappear; they are kept only to honor the
    # PyTorch module's NCHW external layout.
    x = jnp.transpose(x_nchw, (0, 2, 3, 1)).reshape(N, H, W * Cin)

    # Weight / BN prep (tiny; in a real model precompute once per weight set).
    w1b = _build_banded_weights(w1, W, compute_dtype)
    w2b = _build_banded_weights(w2, W, compute_dtype)
    s1t = jnp.tile(s1, W).reshape(1, W * Cout).astype(jnp.float32)
    b1t = jnp.tile(b1, W).reshape(1, W * Cout).astype(jnp.float32)
    s2t = jnp.tile(s2, W).reshape(1, W * Cout).astype(jnp.float32)
    b2t = jnp.tile(b2, W).reshape(1, W * Cout).astype(jnp.float32)

    out = bottleneck2conv_pallas(x, w1b, s1t, b1t, w2b, s2t, b2t,
                                 H=H, W=W, Cout=Cout)
    return jnp.transpose(out.reshape(N, H, W, Cout), (0, 3, 1, 2))


def init_params(key, in_channels, out_channels, eps=1e-5):
    ks = jax.random.split(key, 10)
    w1 = 0.1 * jax.random.normal(ks[0], (3, 3, in_channels, out_channels), jnp.float32)
    w2 = 0.1 * jax.random.normal(ks[1], (3, 3, out_channels, out_channels), jnp.float32)
    g1 = jax.random.uniform(ks[2], (out_channels,), jnp.float32, 0.5, 1.5)
    b1 = 0.1 * jax.random.normal(ks[3], (out_channels,), jnp.float32)
    m1 = 0.1 * jax.random.normal(ks[4], (out_channels,), jnp.float32)
    v1 = jax.random.uniform(ks[5], (out_channels,), jnp.float32, 0.5, 1.5)
    g2 = jax.random.uniform(ks[6], (out_channels,), jnp.float32, 0.5, 1.5)
    b2 = 0.1 * jax.random.normal(ks[7], (out_channels,), jnp.float32)
    m2 = 0.1 * jax.random.normal(ks[8], (out_channels,), jnp.float32)
    v2 = jax.random.uniform(ks[9], (out_channels,), jnp.float32, 0.5, 1.5)

    # Fold BN (inference mode) into per-channel scale/bias.
    s1 = g1 / jnp.sqrt(v1 + eps)
    bb1 = b1 - m1 * s1
    s2 = g2 / jnp.sqrt(v2 + eps)
    bb2 = b2 - m2 * s2
    return dict(w1=w1, s1=s1, b1=bb1, w2=w2, s2=s2, b2=bb2,
                raw=dict(g1=g1, be1=b1, m1=m1, v1=v1,
                         g2=g2, be2=b2, m2=m2, v2=v2, eps=eps))


def reference_forward(x_nchw, params):
    """Pure-JAX reference (lax conv) for correctness checking."""
    r = params["raw"]
    dn = ("NHWC", "HWIO", "NHWC")
    x = jnp.transpose(x_nchw, (0, 2, 3, 1))
    y = lax.conv_general_dilated(x, params["w1"], (1, 1), "SAME",
                                 dimension_numbers=dn)
    y = (y - r["m1"]) / jnp.sqrt(r["v1"] + r["eps"]) * r["g1"] + r["be1"]
    y = jnp.maximum(y, 0.0)
    y = lax.conv_general_dilated(y, params["w2"], (1, 1), "SAME",
                                 dimension_numbers=dn)
    y = (y - r["m2"]) / jnp.sqrt(r["v2"] + r["eps"]) * r["g2"] + r["be2"]
    y = jnp.maximum(y, 0.0)
    return jnp.transpose(y, (0, 3, 1, 2))


if __name__ == "__main__":
    key = jax.random.PRNGKey(0)
    k_x, k_p = jax.random.split(key)

    N, Cin, H, W = 2, 4, 16, 16
    Cout = 8

    x = jax.random.normal(k_x, (N, Cin, H, W), jnp.float32)   # NCHW like PyTorch
    params = init_params(k_p, Cin, Cout)

    out = bottleneck2conv_forward(
        x, params["w1"], params["s1"], params["b1"],
        params["w2"], params["s2"], params["b2"])
    out = jax.block_until_ready(out)

    ref = reference_forward(x, params)
    assert out.shape == (N, Cout, H, W), out.shape
    max_err = float(jnp.max(jnp.abs(out - ref)))
    assert jnp.allclose(out, ref, atol=1e-4, rtol=1e-4), max_err

    print("KERNEL_OK")
</pallas_src>

<mosaic_0001>
module attributes {stable_mosaic.version = 11 : i64} {
  func.func @_fused_block_kernel(%arg0: i32, %arg1: memref<1x16x64xf32, #tpu.memory_space<vmem>>, %arg2: memref<3x64x128xf32, #tpu.memory_space<vmem>>, %arg3: memref<1x128xf32, #tpu.memory_space<vmem>>, %arg4: memref<1x128xf32, #tpu.memory_space<vmem>>, %arg5: memref<3x128x128xf32, #tpu.memory_space<vmem>>, %arg6: memref<1x128xf32, #tpu.memory_space<vmem>>, %arg7: memref<1x128xf32, #tpu.memory_space<vmem>>, %arg8: memref<1x16x128xf32, #tpu.memory_space<vmem>>, %arg9: memref<18x64xf32, #tpu.memory_space<vmem>>, %arg10: memref<18x128xf32, #tpu.memory_space<vmem>>) attributes {dimension_semantics = [#tpu.dimension_semantics<parallel>], iteration_bounds = array<i64: 2>, scalar_prefetch = 0 : i64, scratch_operands = 2 : i64, tpu.core_type = #tpu.core_type<tc>, window_params = [{transform_indices = @transform_0, window_bounds = array<i64: 1, 16, 64>}, {pipeline_mode = #tpu.pipeline_mode<synchronous>, transform_indices = @transform_1, window_bounds = array<i64: 3, 64, 128>}, {pipeline_mode = #tpu.pipeline_mode<synchronous>, transform_indices = @transform_2, window_bounds = array<i64: 1, 128>}, {pipeline_mode = #tpu.pipeline_mode<synchronous>, transform_indices = @transform_3, window_bounds = array<i64: 1, 128>}, {pipeline_mode = #tpu.pipeline_mode<synchronous>, transform_indices = @transform_4, window_bounds = array<i64: 3, 128, 128>}, {pipeline_mode = #tpu.pipeline_mode<synchronous>, transform_indices = @transform_5, window_bounds = array<i64: 1, 128>}, {pipeline_mode = #tpu.pipeline_mode<synchronous>, transform_indices = @transform_6, window_bounds = array<i64: 1, 128>}, {transform_indices = @transform_7, window_bounds = array<i64: 1, 16, 128>}]} {
    %cst = arith.constant 0.000000e+00 : f32
    %0 = vector.broadcast %cst : f32 to vector<1x64xf32>
    %c0 = arith.constant 0 : index
    %c0_0 = arith.constant 0 : index
    %1 = vector.load %arg9[%c0, %c0_0] : memref<18x64xf32, #tpu.memory_space<vmem>>, vector<1x64xf32>
    tpu.vector_store %arg9[%c0, %c0_0], %0 {strides = array<i32>} : memref<18x64xf32, #tpu.memory_space<vmem>>, vector<1x64xf32>,
    %c17 = arith.constant 17 : index
    %c0_1 = arith.constant 0 : index
    %2 = vector.load %arg9[%c17, %c0_1] : memref<18x64xf32, #tpu.memory_space<vmem>>, vector<1x64xf32>
    tpu.vector_store %arg9[%c17, %c0_1], %0 {strides = array<i32>} : memref<18x64xf32, #tpu.memory_space<vmem>>, vector<1x64xf32>,
    %c0_2 = arith.constant 0 : index
    %c0_3 = arith.constant 0 : index
    %c0_4 = arith.constant 0 : index
    %3 = vector.load %arg1[%c0_2, %c0_3, %c0_4] : memref<1x16x64xf32, #tpu.memory_space<vmem>>, vector<1x16x64xf32>
    %4 = vector.shape_cast %3 : vector<1x16x64xf32> to vector<16x64xf32>
    %c1 = arith.constant 1 : index
    %c0_5 = arith.constant 0 : index
    %5 = vector.load %arg9[%c1, %c0_5] : memref<18x64xf32, #tpu.memory_space<vmem>>, vector<16x64xf32>
    tpu.vector_store %arg9[%c1, %c0_5], %4 {strides = array<i32>} : memref<18x64xf32, #tpu.memory_space<vmem>>, vector<16x64xf32>,
    %cst_6 = arith.constant 0.000000e+00 : f32
    %6 = vector.broadcast %cst_6 : f32 to vector<16x128xf32>
    %c0_7 = arith.constant 0 : index
    %c0_8 = arith.constant 0 : index
    %7 = vector.load %arg9[%c0_7, %c0_8] : memref<18x64xf32, #tpu.memory_space<vmem>>, vector<16x64xf32>
    %c0_9 = arith.constant 0 : index
    %c0_10 = arith.constant 0 : index
    %c0_11 = arith.constant 0 : index
    %8 = vector.load %arg2[%c0_9, %c0_10, %c0_11] : memref<3x64x128xf32, #tpu.memory_space<vmem>>, vector<1x64x128xf32>
    %9 = vector.shape_cast %8 : vector<1x64x128xf32> to vector<64x128xf32>
    %cst_12 = arith.constant dense<0.000000e+00> : vector<16x128xf32>
    %10 = tpu.matmul %7, %9, %cst_12 {dimension_numbers = #tpu.dot_dimension_numbers<[1], [0], [0], [1], [0, 0, 1, 1], [], []>} : vector<16x64xf32>, vector<64x128xf32>, vector<16x128xf32> -> vector<16x128xf32>
    %11 = arith.addf %6, %10 : vector<16x128xf32>
    %c1_13 = arith.constant 1 : index
    %c0_14 = arith.constant 0 : index
    %12 = vector.load %arg9[%c1_13, %c0_14] : memref<18x64xf32, #tpu.memory_space<vmem>>, vector<16x64xf32>
    %c1_15 = arith.constant 1 : index
    %c0_16 = arith.constant 0 : index
    %c0_17 = arith.constant 0 : index
    %13 = vector.load %arg2[%c1_15, %c0_16, %c0_17] : memref<3x64x128xf32, #tpu.memory_space<vmem>>, vector<1x64x128xf32>
    %14 = vector.shape_cast %13 : vector<1x64x128xf32> to vector<64x128xf32>
    %cst_18 = arith.constant dense<0.000000e+00> : vector<16x128xf32>
    %15 = tpu.matmul %12, %14, %cst_18 {dimension_numbers = #tpu.dot_dimension_numbers<[1], [0], [0], [1], [0, 0, 1, 1], [], []>} : vector<16x64xf32>, vector<64x128xf32>, vector<16x128xf32> -> vector<16x128xf32>
    %16 = arith.addf %11, %15 : vector<16x128xf32>
    %c2 = arith.constant 2 : index
    %c0_19 = arith.constant 0 : index
    %17 = vector.load %arg9[%c2, %c0_19] : memref<18x64xf32, #tpu.memory_space<vmem>>, vector<16x64xf32>
    %c2_20 = arith.constant 2 : index
    %c0_21 = arith.constant 0 : index
    %c0_22 = arith.constant 0 : index
    %18 = vector.load %arg2[%c2_20, %c0_21, %c0_22] : memref<3x64x128xf32, #tpu.memory_space<vmem>>, vector<1x64x128xf32>
    %19 = vector.shape_cast %18 : vector<1x64x128xf32> to vector<64x128xf32>
    %cst_23 = arith.constant dense<0.000000e+00> : vector<16x128xf32>
    %20 = tpu.matmul %17, %19, %cst_23 {dimension_numbers = #tpu.dot_dimension_numbers<[1], [0], [0], [1], [0, 0, 1, 1], [], []>} : vector<16x64xf32>, vector<64x128xf32>, vector<16x128xf32> -> vector<16x128xf32>
    %21 = arith.addf %16, %20 : vector<16x128xf32>
    %c0_24 = arith.constant 0 : index
    %c0_25 = arith.constant 0 : index
    %22 = vector.load %arg3[%c0_24, %c0_25] : memref<1x128xf32, #tpu.memory_space<vmem>>, vector<1x128xf32>
    %23 = vector.broadcast %22 : vector<1x128xf32> to vector<16x128xf32>
    %24 = arith.mulf %21, %23 : vector<16x128xf32>
    %c0_26 = arith.constant 0 : index
    %c0_27 = arith.constant 0 : index
    %25 = vector.load %arg4[%c0_26, %c0_27] : memref<1x128xf32, #tpu.memory_space<vmem>>, vector<1x128xf32>
    %26 = vector.broadcast %25 : vector<1x128xf32> to vector<16x128xf32>
    %27 = arith.addf %24, %26 : vector<16x128xf32>
    %cst_28 = arith.constant 0.000000e+00 : f32
    %28 = vector.broadcast %cst_28 : f32 to vector<16x128xf32>
    %29 = arith.maximumf %27, %28 : vector<16x128xf32>
    %cst_29 = arith.constant 0.000000e+00 : f32
    %30 = vector.broadcast %cst_29 : f32 to vector<1x128xf32>
    %c0_30 = arith.constant 0 : index
    %c0_31 = arith.constant 0 : index
    %31 = vector.load %arg10[%c0_30, %c0_31] : memref<18x128xf32, #tpu.memory_space<vmem>>, vector<1x128xf32>
    tpu.vector_store %arg10[%c0_30, %c0_31], %30 {strides = array<i32>} : memref<18x128xf32, #tpu.memory_space<vmem>>, vector<1x128xf32>,
    %c17_32 = arith.constant 17 : index
    %c0_33 = arith.constant 0 : index
    %32 = vector.load %arg10[%c17_32, %c0_33] : memref<18x128xf32, #tpu.memory_space<vmem>>, vector<1x128xf32>
    tpu.vector_store %arg10[%c17_32, %c0_33], %30 {strides = array<i32>} : memref<18x128xf32, #tpu.memory_space<vmem>>, vector<1x128xf32>,
    %c1_34 = arith.constant 1 : index
    %c0_35 = arith.constant 0 : index
    %33 = vector.load %arg10[%c1_34, %c0_35] : memref<18x128xf32, #tpu.memory_space<vmem>>, vector<16x128xf32>
    tpu.vector_store %arg10[%c1_34, %c0_35], %29 {strides = array<i32>} : memref<18x128xf32, #tpu.memory_space<vmem>>, vector<16x128xf32>,
    %cst_36 = arith.constant 0.000000e+00 : f32
    %34 = vector.broadcast %cst_36 : f32 to vector<16x128xf32>
    %c0_37 = arith.constant 0 : index
    %c0_38 = arith.constant 0 : index
    %35 = vector.load %arg10[%c0_37, %c0_38] : memref<18x128xf32, #tpu.memory_space<vmem>>, vector<16x128xf32>
    %c0_39 = arith.constant 0 : index
    %c0_40 = arith.constant 0 : index
    %c0_41 = arith.constant 0 : index
    %36 = vector.load %arg5[%c0_39, %c0_40, %c0_41] : memref<3x128x128xf32, #tpu.memory_space<vmem>>, vector<1x128x128xf32>
    %37 = vector.shape_cast %36 : vector<1x128x128xf32> to vector<128x128xf32>
    %cst_42 = arith.constant dense<0.000000e+00> : vector<16x128xf32>
    %38 = tpu.matmul %35, %37, %cst_42 {dimension_numbers = #tpu.dot_dimension_numbers<[1], [0], [0], [1], [0, 0, 1, 1], [], []>} : vector<16x128xf32>, vector<128x128xf32>, vector<16x128xf32> -> vector<16x128xf32>
    %39 = arith.addf %34, %38 : vector<16x128xf32>
    %c1_43 = arith.constant 1 : index
    %c0_44 = arith.constant 0 : index
    %40 = vector.load %arg10[%c1_43, %c0_44] : memref<18x128xf32, #tpu.memory_space<vmem>>, vector<16x128xf32>
    %c1_45 = arith.constant 1 : index
    %c0_46 = arith.constant 0 : index
    %c0_47 = arith.constant 0 : index
    %41 = vector.load %arg5[%c1_45, %c0_46, %c0_47] : memref<3x128x128xf32, #tpu.memory_space<vmem>>, vector<1x128x128xf32>
    %42 = vector.shape_cast %41 : vector<1x128x128xf32> to vector<128x128xf32>
    %cst_48 = arith.constant dense<0.000000e+00> : vector<16x128xf32>
    %43 = tpu.matmul %40, %42, %cst_48 {dimension_numbers = #tpu.dot_dimension_numbers<[1], [0], [0], [1], [0, 0, 1, 1], [], []>} : vector<16x128xf32>, vector<128x128xf32>, vector<16x128xf32> -> vector<16x128xf32>
    %44 = arith.addf %39, %43 : vector<16x128xf32>
    %c2_49 = arith.constant 2 : index
    %c0_50 = arith.constant 0 : index
    %45 = vector.load %arg10[%c2_49, %c0_50] : memref<18x128xf32, #tpu.memory_space<vmem>>, vector<16x128xf32>
    %c2_51 = arith.constant 2 : index
    %c0_52 = arith.constant 0 : index
    %c0_53 = arith.constant 0 : index
    %46 = vector.load %arg5[%c2_51, %c0_52, %c0_53] : memref<3x128x128xf32, #tpu.memory_space<vmem>>, vector<1x128x128xf32>
    %47 = vector.shape_cast %46 : vector<1x128x128xf32> to vector<128x128xf32>
    %cst_54 = arith.constant dense<0.000000e+00> : vector<16x128xf32>
    %48 = tpu.matmul %45, %47, %cst_54 {dimension_numbers = #tpu.dot_dimension_numbers<[1], [0], [0], [1], [0, 0, 1, 1], [], []>} : vector<16x128xf32>, vector<128x128xf32>, vector<16x128xf32> -> vector<16x128xf32>
    %49 = arith.addf %44, %48 : vector<16x128xf32>
    %c0_55 = arith.constant 0 : index
    %c0_56 = arith.constant 0 : index
    %50 = vector.load %arg6[%c0_55, %c0_56] : memref<1x128xf32, #tpu.memory_space<vmem>>, vector<1x128xf32>
    %51 = vector.broadcast %50 : vector<1x128xf32> to vector<16x128xf32>
    %52 = arith.mulf %49, %51 : vector<16x128xf32>
    %c0_57 = arith.constant 0 : index
    %c0_58 = arith.constant 0 : index
    %53 = vector.load %arg7[%c0_57, %c0_58] : memref<1x128xf32, #tpu.memory_space<vmem>>, vector<1x128xf32>
    %54 = vector.broadcast %53 : vector<1x128xf32> to vector<16x128xf32>
    %55 = arith.addf %52, %54 : vector<16x128xf32>
    %cst_59 = arith.constant 0.000000e+00 : f32
    %56 = vector.broadcast %cst_59 : f32 to vector<16x128xf32>
    %57 = arith.maximumf %55, %56 : vector<16x128xf32>
    %c0_60 = arith.constant 0 : index
    %c0_61 = arith.constant 0 : index
    %c0_62 = arith.constant 0 : index
    %58 = vector.load %arg8[%c0_60, %c0_61, %c0_62] : memref<1x16x128xf32, #tpu.memory_space<vmem>>, vector<1x16x128xf32>
    %59 = vector.shape_cast %58 : vector<1x16x128xf32> to vector<16x128xf32>
    %60 = vector.shape_cast %57 : vector<16x128xf32> to vector<1x16x128xf32>
    tpu.vector_store %arg8[%c0_60, %c0_61, %c0_62], %60 {strides = array<i32>} : memref<1x16x128xf32, #tpu.memory_space<vmem>>, vector<1x16x128xf32>,
    return
  }
  func.func @transform_0(%arg0: i32) -> (i32, i32, i32) {
    %c0_i32 = arith.constant 0 : i32
    %c0_i32_0 = arith.constant 0 : i32
    %c0_i32_1 = arith.constant 0 : i32
    return %arg0, %c0_i32, %c0_i32_0 : i32, i32, i32
  }
  func.func @transform_1(%arg0: i32) -> (i32, i32, i32) {
    %c0_i32 = arith.constant 0 : i32
    %c0_i32_0 = arith.constant 0 : i32
    %c0_i32_1 = arith.constant 0 : i32
    %c0_i32_2 = arith.constant 0 : i32
    return %c0_i32, %c0_i32_0, %c0_i32_1 : i32, i32, i32
  }
  func.func @transform_2(%arg0: i32) -> (i32, i32) {
    %c0_i32 = arith.constant 0 : i32
    %c0_i32_0 = arith.constant 0 : i32
    %c0_i32_1 = arith.constant 0 : i32
    return %c0_i32, %c0_i32_0 : i32, i32
  }
  func.func @transform_3(%arg0: i32) -> (i32, i32) {
    %c0_i32 = arith.constant 0 : i32
    %c0_i32_0 = arith.constant 0 : i32
    %c0_i32_1 = arith.constant 0 : i32
    return %c0_i32, %c0_i32_0 : i32, i32
  }
  func.func @transform_4(%arg0: i32) -> (i32, i32, i32) {
    %c0_i32 = arith.constant 0 : i32
    %c0_i32_0 = arith.constant 0 : i32
    %c0_i32_1 = arith.constant 0 : i32
    %c0_i32_2 = arith.constant 0 : i32
    return %c0_i32, %c0_i32_0, %c0_i32_1 : i32, i32, i32
  }
  func.func @transform_5(%arg0: i32) -> (i32, i32) {
    %c0_i32 = arith.constant 0 : i32
    %c0_i32_0 = arith.constant 0 : i32
    %c0_i32_1 = arith.constant 0 : i32
    return %c0_i32, %c0_i32_0 : i32, i32
  }
  func.func @transform_6(%arg0: i32) -> (i32, i32) {
    %c0_i32 = arith.constant 0 : i32
    %c0_i32_0 = arith.constant 0 : i32
    %c0_i32_1 = arith.constant 0 : i32
    return %c0_i32, %c0_i32_0 : i32, i32
  }
  func.func @transform_7(%arg0: i32) -> (i32, i32, i32) {
    %c0_i32 = arith.constant 0 : i32
    %c0_i32_0 = arith.constant 0 : i32
    %c0_i32_1 = arith.constant 0 : i32
    return %arg0, %c0_i32, %c0_i32_0 : i32, i32, i32
  }
}

</mosaic_0001>

<llo_original>
// kernel: tile.23
$region0: #{tile.23}
  #allocation0 [shape = 's32[1]{0}', space=sflag, size = 0x4, scoped, tag = 'scoped memory for tile.23']
  %s0 = inlined_call_operand.vmem [shape: f32[8], index: 0, kind: input, shape index: {}]
  %s1 = inlined_call_operand.vmem [shape: f32[16,8], index: 1, kind: output, shape index: {}]
  // Predicated region
  $region2: #{tile.23} parent=0 // pred_check
    _
  $region3: #{tile.23} parent=0 // pred_check_branch
    %3 = sbr.rel (0) target = $region5
  $region4: #{tile.23} parent=0 // pred_region
    _
  $region5: #{tile.23} parent=0 // pred_fallthru
    _
  %v4 = vld [vmem:[%s0] ss:$0 sm:$0xff]
  %5 = vst [vmem:[%s1] sm:$0xff] %v4
  %s6 = scalar_lea.vmem %s1, 8
  %7 = vst [vmem:[%s6] sm:$0xff] %v4

// kernel: tile.24
$region0: #{tile.24}
  %s0 = inlined_call_operand.vmem [shape: f32[16,8], index: 0, kind: input, shape index: {}]
  %s1 = inlined_call_operand.vmem [shape: f32[1,128], index: 1, kind: output, shape index: {}]
  $region1: #{tile.24} parent=0
    #allocation0 [shape = 'u8[4096]{0}', space=vmem, size = 0x1000, scoped, tag = 'scoped mem for output reshape']
    %v2 = vld [vmem:[%s0] sm:$0x1]
    %vm3 = vcmask 64512
    %4 = vst.msk [vmem:[#allocation0] sm:$0x1] %vm3, %v2
    %s5 = scalar_lea.vmem %s0, 15
    %v6 = vld [vmem:[%s5] sm:$0x1]
    %7 = vrot.lane.b32.xlu0 %v6, 120
    %v8 = vpop.permute.xlu0 %7
    %vm9 = vcmask 1048512
    %10 = vst.msk [vmem:[#allocation0] sm:$0x1] %vm9, %v8
    %s11 = scalar_lea.vmem %s0, 14
    %v12 = vld [vmem:[%s11] sm:$0x1]
    %13 = vrot.lane.b32.xlu0 %v12, 112
    %v14 = vpop.permute.xlu0 %13
    %vm15 = vcmask 982912
    %16 = vst.msk [vmem:[#allocation0] sm:$0x1] %vm15, %v14
    %s17 = scalar_lea.vmem %s0, 13
    %v18 = vld [vmem:[%s17] sm:$0x1]
    %19 = vrot.lane.b32.xlu0 %v18, 104
    %v20 = vpop.permute.xlu0 %19
    %vm21 = vcmask 917312
    %22 = vst.msk [vmem:[#allocation0] sm:$0x1] %vm21, %v20
    %s23 = scalar_lea.vmem %s0, 12
    %v24 = vld [vmem:[%s23] sm:$0x1]
    %25 = vrot.lane.b32.xlu0 %v24, 96
    %v26 = vpop.permute.xlu0 %25
    %vm27 = vcmask 851712
    %28 = vst.msk [vmem:[#allocation0] sm:$0x1] %vm27, %v26
    %s29 = scalar_lea.vmem %s0, 11
    %v30 = vld [vmem:[%s29] sm:$0x1]
    %31 = vrot.lane.b32.xlu0 %v30, 88
    %v32 = vpop.permute.xlu0 %31
    %vm33 = vcmask 786112
    %34 = vst.msk [vmem:[#allocation0] sm:$0x1] %vm33, %v32
    %s35 = scalar_lea.vmem %s0, 10
    %v36 = vld [vmem:[%s35] sm:$0x1]
    %37 = vrot.lane.b32.xlu0 %v36, 80
    %v38 = vpop.permute.xlu0 %37
    %vm39 = vcmask 720512
    %40 = vst.msk [vmem:[#allocation0] sm:$0x1] %vm39, %v38
    %s41 = scalar_lea.vmem %s0, 9
    %v42 = vld [vmem:[%s41] sm:$0x1]
    %43 = vrot.lane.b32.xlu0 %v42, 72
    %v44 = vpop.permute.xlu0 %43
    %vm45 = vcmask 654912
    %46 = vst.msk [vmem:[#allocation0] sm:$0x1] %vm45, %v44
    %s47 = scalar_lea.vmem %s0, 8
    %v48 = vld [vmem:[%s47] sm:$0x1]
    %49 = vrot.lane.b32.xlu0 %v48, 64
    %v50 = vpop.permute.xlu0 %49
    %vm51 = vcmask 589312
    %52 = vst.msk [vmem:[#allocation0] sm:$0x1] %vm51, %v50
    %s53 = scalar_lea.vmem %s0, 7
    %v54 = vld [vmem:[%s53] sm:$0x1]
    %55 = vrot.lane.b32.xlu0 %v54, 56
    %v56 = vpop.permute.xlu0 %55
    %vm57 = vcmask 523712
    %58 = vst.msk [vmem:[#allocation0] sm:$0x1] %vm57, %v56
    %s59 = scalar_lea.vmem %s0, 6
    %v60 = vld [vmem:[%s59] sm:$0x1]
    %61 = vrot.lane.b32.xlu0 %v60, 48
    %v62 = vpop.permute.xlu0 %61
    %vm63 = vcmask 458112
    %64 = vst.msk [vmem:[#allocation0] sm:$0x1] %vm63, %v62
    %s65 = scalar_lea.vmem %s0, 5
    %v66 = vld [vmem:[%s65] sm:$0x1]
    %67 = vrot.lane.b32.xlu0 %v66, 40
    %v68 = vpop.permute.xlu0 %67
    %vm69 = vcmask 392512
    %70 = vst.msk [vmem:[#allocation0] sm:$0x1] %vm69, %v68
    %s71 = scalar_lea.vmem %s0, 4
    %v72 = vld [vmem:[%s71] sm:$0x1]
    %73 = vrot.lane.b32.xlu0 %v72, 32
    %v74 = vpop.permute.xlu0 %73
    %vm75 = vcmask 326912
    %76 = vst.msk [vmem:[#allocation0] sm:$0x1] %vm75, %v74
    %s77 = scalar_lea.vmem %s0, 3
    %v78 = vld [vmem:[%s77] sm:$0x1]
    %79 = vrot.lane.b32.xlu0 %v78, 24
    %v80 = vpop.permute.xlu0 %79
    %vm81 = vcmask 261312
    %82 = vst.msk [vmem:[#allocation0] sm:$0x1] %vm81, %v80
    %s83 = scalar_lea.vmem %s0, 2
    %v84 = vld [vmem:[%s83] sm:$0x1]
    %85 = vrot.lane.b32.xlu0 %v84, 16
    %v86 = vpop.permute.xlu0 %85
    %vm87 = vcmask 195712
    %88 = vst.msk [vmem:[#allocation0] sm:$0x1] %vm87, %v86
    %s89 = scalar_lea.vmem %s0, 1
    %v90 = vld [vmem:[%s89] sm:$0x1]
    %91 = vrot.lane.b32.xlu0 %v90, 8
    %v92 = vpop.permute.xlu0 %91
    %vm93 = vcmask 130112
    %94 = vst.msk [vmem:[#allocation0] sm:$0x1] %vm93, %v92
    %s96 = sshllo.u32 0, 1
    %v98 = vld [vmem:[#allocation0] sm:%s96]
    %s99 = sshllo.u32 0, 1
    %100 = vst [vmem:[%s1] sm:%s99] %v98

// kernel: bottleneck2conv_forward.1
$region0: #{bottleneck2conv_forward.1}
  #allocation0 [shape = 'u32[]', space=smem, size = 0x4, offset = 0x4, fixed_abs, tag = 'smem constant byte address 0x4 - core index']
  #allocation1 [shape = 'u32[144,128]{1,0:T(1,128)}', space=vmem, size = 0x12000, scoped, tag = 'internal scratch']
  #allocation2 [shape = 'f32[18,64]{1,0:T(8,128)}', space=vmem, size = 0x3000, scoped, tag = 'scratch operand']
  #allocation3 [shape = 'f32[18,128]{1,0:T(8,128)}', space=vmem, size = 0x3000, scoped, tag = 'scratch operand']
  %s0 = inlined_call_operand.vmem [shape: f32[2,16,64], index: 0, kind: input, shape index: {}]
  %s1 = inlined_call_operand.vmem [shape: f32[3,64,128], index: 1, kind: input, shape index: {}]
  %s2 = inlined_call_operand.vmem [shape: f32[1,128], index: 2, kind: input, shape index: {}]
  %s3 = inlined_call_operand.vmem [shape: f32[1,128], index: 3, kind: input, shape index: {}]
  %s4 = inlined_call_operand.vmem [shape: f32[3,128,128], index: 4, kind: input, shape index: {}]
  %s5 = inlined_call_operand.vmem [shape: f32[1,128], index: 5, kind: input, shape index: {}]
  %s6 = inlined_call_operand.vmem [shape: f32[1,128], index: 6, kind: input, shape index: {}]
  %s7 = inlined_call_operand.vmem [shape: f32[2,16,128], index: 7, kind: output, shape index: {}]
  %s8 = sld [smem:[#allocation0]]
  $region61: #{bottleneck2conv_forward.1} parent=0
    _
  %s10 = ssub.s32 1, %s8
  %s11 = scalar_select 0, %s10, %s8
  loop: start=0, step=1, limit=4
  $region2: #{bottleneck2conv_forward.1} parent=0 // loop_pre_header
    _
  $region3: #{bottleneck2conv_forward.1} parent=0 // loop_header
    %s13 = sphi 0, %s17
    %p14 = scmp.ge.s32.totalorder %s13, 4
    %s23 = sphi 0, %s25
    %s26 = sphi 0, %s23
    %s27 = sphi 0, %s26
    %s43 = sphi 0, %s27
    %s47 = sphi 0, %s47
    %s49 = sphi 0, %s47
    %s50 = sphi 0, %s49
    %s64 = sphi 0, %s50
    %s68 = sphi 0, %s68
    %s70 = sphi 0, %s68
    %s71 = sphi 0, %s70
    %s85 = sphi 0, %s71
    %s89 = sphi 0, %s89
    %s91 = sphi 0, %s89
    %s92 = sphi 0, %s91
    %s106 = sphi 0, %s92
    %s110 = sphi 0, %s110
    %s112 = sphi 0, %s110
    %s113 = sphi 0, %s112
    %s127 = sphi 0, %s113
    %s131 = sphi 0, %s131
    %s133 = sphi 0, %s131
    %s134 = sphi 0, %s133
    %s148 = sphi 0, %s134
    %s152 = sphi 0, %s152
    %s154 = sphi 0, %s152
    %s155 = sphi 0, %s154
    %s169 = sphi 0, %s155
    %s175 = sphi 0, %s177
    %s178 = sphi 0, %s175
    %s179 = sphi 0, %s178
    %s195 = sphi 0, %s179
  $region4: #{bottleneck2conv_forward.1} parent=0 // loop_header_branch
    %16 = sbr.rel (%p14) target = $region8
  $region5: #{bottleneck2conv_forward.1} parent=0 // loop_body
    %s18 = ssub.s32 %s13, 1
    %s19 = ssub.s32 %s13, 2
    %s20 = sadd.s32 %s13, 1
    %s21 = ssub.s32 %s13, %s20
    %p22 = scmp.eq.s32.totalorder %s21, 0
    %s24 = sadd.s32 %s23, 1
    %s25 = scalar_select %p22, %s23, %s24
    %p28 = pneg %p22
    %p29 = scmp.eq.s32.totalorder %s13, 1
    %p30 = por %p28, %p29
    %p31 = scmp.ne.s32.totalorder %s23, %s26
    %p32 = scmp.eq.s32.totalorder %s13, 0
    %p33 = por %p31, %p32
    %p34 = scmp.ne.s32.totalorder %s23, %s26
    %p35 = scmp.eq.s32.totalorder %s18, 1
    %p36 = por %p34, %p35
    %p37 = scmp.ne.s32.totalorder %s26, %s27
    %p38 = scmp.eq.s32.totalorder %s18, 0
    %p39 = por %p37, %p38
    %p40 = scmp.ne.s32.totalorder %s26, %s27
    %p41 = scmp.eq.s32.totalorder %s19, 1
    %p42 = por %p40, %p41
    %p44 = scmp.ne.s32.totalorder %s27, %s43
    %p45 = scmp.eq.s32.totalorder %s19, 0
    %p46 = por %p44, %p45
    %s48 = sadd.s32 %s47, 1
    %p51 = scmp.eq.s32.totalorder %s13, 1
    %p52 = scmp.ne.s32.totalorder %s47, %s49
    %p53 = scmp.eq.s32.totalorder %s13, 0
    %p54 = por %p52, %p53
    %p55 = scmp.ne.s32.totalorder %s47, %s49
    %p56 = scmp.eq.s32.totalorder %s18, 1
    %p57 = por %p55, %p56
    %p58 = scmp.ne.s32.totalorder %s49, %s50
    %p59 = scmp.eq.s32.totalorder %s18, 0
    %p60 = por %p58, %p59
    %p61 = scmp.ne.s32.totalorder %s49, %s50
    %p62 = scmp.eq.s32.totalorder %s19, 1
    %p63 = por %p61, %p62
    %p65 = scmp.ne.s32.totalorder %s50, %s64
    %p66 = scmp.eq.s32.totalorder %s19, 0
    %p67 = por %p65, %p66
    %s69 = sadd.s32 %s68, 1
    %p72 = scmp.eq.s32.totalorder %s13, 1
    %p73 = scmp.ne.s32.totalorder %s68, %s70
    %p74 = scmp.eq.s32.totalorder %s13, 0
    %p75 = por %p73, %p74
    %p76 = scmp.ne.s32.totalorder %s68, %s70
    %p77 = scmp.eq.s32.totalorder %s18, 1
    %p78 = por %p76, %p77
    %p79 = scmp.ne.s32.totalorder %s70, %s71
    %p80 = scmp.eq.s32.totalorder %s18, 0
    %p81 = por %p79, %p80
    %p82 = scmp.ne.s32.totalorder %s70, %s71
    %p83 = scmp.eq.s32.totalorder %s19, 1
    %p84 = por %p82, %p83
    %p86 = scmp.ne.s32.totalorder %s71, %s85
    %p87 = scmp.eq.s32.totalorder %s19, 0
    %p88 = por %p86, %p87
    %s90 = sadd.s32 %s89, 1
    %p93 = scmp.eq.s32.totalorder %s13, 1
    %p94 = scmp.ne.s32.totalorder %s89, %s91
    %p95 = scmp.eq.s32.totalorder %s13, 0
    %p96 = por %p94, %p95
    %p97 = scmp.ne.s32.totalorder %s89, %s91
    %p98 = scmp.eq.s32.totalorder %s18, 1
    %p99 = por %p97, %p98
    %p100 = scmp.ne.s32.totalorder %s91, %s92
    %p101 = scmp.eq.s32.totalorder %s18, 0
    %p102 = por %p100, %p101
    %p103 = scmp.ne.s32.totalorder %s91, %s92
    %p104 = scmp.eq.s32.totalorder %s19, 1
    %p105 = por %p103, %p104
    %p107 = scmp.ne.s32.totalorder %s92, %s106
    %p108 = scmp.eq.s32.totalorder %s19, 0
    %p109 = por %p107, %p108
    %s111 = sadd.s32 %s110, 1
    %p114 = scmp.eq.s32.totalorder %s13, 1
    %p115 = scmp.ne.s32.totalorder %s110, %s112
    %p116 = scmp.eq.s32.totalorder %s13, 0
    %p117 = por %p115, %p116
    %p118 = scmp.ne.s32.totalorder %s110, %s112
    %p119 = scmp.eq.s32.totalorder %s18, 1
    %p120 = por %p118, %p119
    %p121 = scmp.ne.s32.totalorder %s112, %s113
    %p122 = scmp.eq.s32.totalorder %s18, 0
    %p123 = por %p121, %p122
    %p124 = scmp.ne.s32.totalorder %s112, %s113
    %p125 = scmp.eq.s32.totalorder %s19, 1
    %p126 = por %p124, %p125
    %p128 = scmp.ne.s32.totalorder %s113, %s127
    %p129 = scmp.eq.s32.totalorder %s19, 0
    %p130 = por %p128, %p129
    %s132 = sadd.s32 %s131, 1
    %p135 = scmp.eq.s32.totalorder %s13, 1
    %p136 = scmp.ne.s32.totalorder %s131, %s133
    %p137 = scmp.eq.s32.totalorder %s13, 0
    %p138 = por %p136, %p137
    %p139 = scmp.ne.s32.totalorder %s131, %s133
    %p140 = scmp.eq.s32.totalorder %s18, 1
    %p141 = por %p139, %p140
    %p142 = scmp.ne.s32.totalorder %s133, %s134
    %p143 = scmp.eq.s32.totalorder %s18, 0
    %p144 = por %p142, %p143
    %p145 = scmp.ne.s32.totalorder %s133, %s134
    %p146 = scmp.eq.s32.totalorder %s19, 1
    %p147 = por %p145, %p146
    %p149 = scmp.ne.s32.totalorder %s134, %s148
    %p150 = scmp.eq.s32.totalorder %s19, 0
    %p151 = por %p149, %p150
    %s153 = sadd.s32 %s152, 1
    %p156 = scmp.eq.s32.totalorder %s13, 1
    %p157 = scmp.ne.s32.totalorder %s152, %s154
    %p158 = scmp.eq.s32.totalorder %s13, 0
    %p159 = por %p157, %p158
    %p160 = scmp.ne.s32.totalorder %s152, %s154
    %p161 = scmp.eq.s32.totalorder %s18, 1
    %p162 = por %p160, %p161
    %p163 = scmp.ne.s32.totalorder %s154, %s155
    %p164 = scmp.eq.s32.totalorder %s18, 0
    %p165 = por %p163, %p164
    %p166 = scmp.ne.s32.totalorder %s154, %s155
    %p167 = scmp.eq.s32.totalorder %s19, 1
    %p168 = por %p166, %p167
    %p170 = scmp.ne.s32.totalorder %s155, %s169
    %p171 = scmp.eq.s32.totalorder %s19, 0
    %p172 = por %p170, %p171
    %s173 = ssub.s32 %s13, %s20
    %p174 = scmp.eq.s32.totalorder %s173, 0
    %s176 = sadd.s32 %s175, 1
    %s177 = scalar_select %p174, %s175, %s176
    %p180 = pneg %p174
    %p181 = scmp.eq.s32.totalorder %s13, 1
    %p182 = por %p180, %p181
    %p183 = scmp.ne.s32.totalorder %s175, %s178
    %p184 = scmp.eq.s32.totalorder %s13, 0
    %p185 = por %p183, %p184
    %p186 = scmp.ne.s32.totalorder %s175, %s178
    %p187 = scmp.eq.s32.totalorder %s18, 1
    %p188 = por %p186, %p187
    %p189 = scmp.ne.s32.totalorder %s178, %s179
    %p190 = scmp.eq.s32.totalorder %s18, 0
    %p191 = por %p189, %p190
    %p192 = scmp.ne.s32.totalorder %s178, %s179
    %p193 = scmp.eq.s32.totalorder %s19, 1
    %p194 = por %p192, %p193
    %p196 = scmp.ne.s32.totalorder %s179, %s195
    %p197 = scmp.eq.s32.totalorder %s19, 0
    %p198 = por %p196, %p197
    %p199 = scmp.le.s32.totalorder 1, %s13
    %p200 = scmp.lt.s32.totalorder %s13, 3
    %p201 = pnand %p199, %p200
    %p202 = pneg %p201
    // Predicated region
    $region9: #{bottleneck2conv_forward.1} parent=5 // pred_check
      _
    $region10: #{bottleneck2conv_forward.1} parent=5 // pred_check_branch
      %204 = sbr.rel (%p201) target = $region12
    $region11: #{bottleneck2conv_forward.1} parent=5 // pred_region
      %s205 = ssub.s32 %s13, 1
      // Predicated region
      $region13: #{bottleneck2conv_forward.1} parent=11 // pred_check
        %p206 = pneg %p60
      $region14: #{bottleneck2conv_forward.1} parent=11 // pred_check_branch
        %208 = sbr.rel (%p206) target = $region16
      $region15: #{bottleneck2conv_forward.1} parent=11 // pred_region
        _
      $region16: #{bottleneck2conv_forward.1} parent=11 // pred_fallthru
        _
      // Predicated region
      $region17: #{bottleneck2conv_forward.1} parent=11 // pred_check
        %p209 = pneg %p81
      $region18: #{bottleneck2conv_forward.1} parent=11 // pred_check_branch
        %211 = sbr.rel (%p209) target = $region20
      $region19: #{bottleneck2conv_forward.1} parent=11 // pred_region
        _
      $region20: #{bottleneck2conv_forward.1} parent=11 // pred_fallthru
        _
      // Predicated region
      $region21: #{bottleneck2conv_forward.1} parent=11 // pred_check
        %p212 = pneg %p102
      $region22: #{bottleneck2conv_forward.1} parent=11 // pred_check_branch
        %214 = sbr.rel (%p212) target = $region24
      $region23: #{bottleneck2conv_forward.1} parent=11 // pred_region
        _
      $region24: #{bottleneck2conv_forward.1} parent=11 // pred_fallthru
        _
      // Predicated region
      $region25: #{bottleneck2conv_forward.1} parent=11 // pred_check
        %p215 = pneg %p123
      $region26: #{bottleneck2conv_forward.1} parent=11 // pred_check_branch
        %217 = sbr.rel (%p215) target = $region28
      $region27: #{bottleneck2conv_forward.1} parent=11 // pred_region
        _
      $region28: #{bottleneck2conv_forward.1} parent=11 // pred_fallthru
        _
      // Predicated region
      $region29: #{bottleneck2conv_forward.1} parent=11 // pred_check
        %p218 = pneg %p144
      $region30: #{bottleneck2conv_forward.1} parent=11 // pred_check_branch
        %220 = sbr.rel (%p218) target = $region32
      $region31: #{bottleneck2conv_forward.1} parent=11 // pred_region
        _
      $region32: #{bottleneck2conv_forward.1} parent=11 // pred_fallthru
        _
      // Predicated region
      $region33: #{bottleneck2conv_forward.1} parent=11 // pred_check
        %p221 = pneg %p165
      $region34: #{bottleneck2conv_forward.1} parent=11 // pred_check_branch
        %223 = sbr.rel (%p221) target = $region36
      $region35: #{bottleneck2conv_forward.1} parent=11 // pred_region
        _
      $region36: #{bottleneck2conv_forward.1} parent=11 // pred_fallthru
        _
    $region12: #{bottleneck2conv_forward.1} parent=5 // pred_fallthru
      _
    %p224 = scmp.lt.s32.totalorder %s13, 2
    // Predicated region
    $region37: #{bottleneck2conv_forward.1} parent=5 // pred_check
      %p225 = pneg %p224
    $region38: #{bottleneck2conv_forward.1} parent=5 // pred_check_branch
      %227 = sbr.rel (%p225) target = $region40
    $region39: #{bottleneck2conv_forward.1} parent=5 // pred_region
      // Predicated region
      $region41: #{bottleneck2conv_forward.1} parent=39 // pred_check
        %p228 = pneg %p33
      $region42: #{bottleneck2conv_forward.1} parent=39 // pred_check_branch
        %230 = sbr.rel (%p228) target = $region44
      $region43: #{bottleneck2conv_forward.1} parent=39 // pred_region
        %p231 = scmp.lt.s32.totalorder %s13, 1
        %s232 = scalar_select %p231, %s13, 1
        %s233 = smul.addr %s232, 2
        %s234 = smul.addr %s233, 8
        %s235 = scalar_lea.vmem %s0, %s234
      $region44: #{bottleneck2conv_forward.1} parent=39 // pred_fallthru
        _
    $region40: #{bottleneck2conv_forward.1} parent=5 // pred_fallthru
      _
    %p236 = scmp.le.s32.totalorder 1, %s13
    %p237 = scmp.lt.s32.totalorder %s13, 3
    %p238 = pnand %p236, %p237
    %p239 = pneg %p238
    // Predicated region
    $region45: #{bottleneck2conv_forward.1} parent=5 // pred_check
      _
    $region46: #{bottleneck2conv_forward.1} parent=5 // pred_check_branch
      %241 = sbr.rel (%p238) target = $region48
    $region47: #{bottleneck2conv_forward.1} parent=5 // pred_region
      %s242 = ssub.s32 %s13, 1
      %p243 = scmp.lt.s32.totalorder %s18, 1
      %s244 = scalar_select %p243, %s18, 1
      %s245 = smul.addr %s244, 2
      %s246 = smul.addr %s245, 8
      %s247 = scalar_lea.vmem %s0, %s246
      %p248 = pneg %p39
      %p249 = pneg %p36
      %p250 = pneg %p60
      %p251 = pneg %p57
      %p252 = pneg %p81
      %p253 = pneg %p78
      %p254 = pneg %p102
      %p255 = pneg %p99
      %p256 = pneg %p123
      %p257 = pneg %p120
      %p258 = pneg %p144
      %p259 = pneg %p141
      %p260 = pneg %p165
      %p261 = pneg %p162
      %p262 = pneg %p191
      %p263 = pneg %p188
      %p264 = scmp.lt.s32.totalorder %s18, 1
      %s265 = scalar_select %p264, %s18, 1
      %s266 = smul.addr %s265, 2
      %s267 = smul.addr %s266, 8
      %s268 = scalar_lea.vmem %s7, %s267
      %p269 = scmp.lt.s32.totalorder %s18, 1
      %s270 = scalar_select %p269, %s18, 1
      %s271 = smul.addr %s270, 2
      %s272 = smul.addr %s271, 8
      %s273 = scalar_lea.vmem %s0, %s272
      %p274 = scmp.lt.s32.totalorder %s18, 1
      %s275 = scalar_select %p274, %s18, 1
      %s276 = smul.addr %s275, 2
      %s277 = smul.addr %s276, 8
      %s278 = scalar_lea.vmem %s7, %s277
      %vm279 = vcmask 516096
      %280 = vst.msk [vmem:[#allocation2] sm:$0x1] %vm279, 0.0
      %281 = vst.msk [vmem:[#allocation2 + $0x11] sm:$0x1] %vm279, 0.0
      %v282 = vld [vmem:[%s273] sm:$0xff]
      %v283 = vld [vmem:[%s273 + $0x8] sm:$0xff]
      %vm284 = vcmask 523264
      %285 = vst.msk [vmem:[#allocation2 + $0x1] sm:$0xff] %vm284, %v282
      %286 = vst.msk [vmem:[#allocation2 + $0x9] sm:$0xff] %vm284, %v283
      %v287 = vld [vmem:[#allocation2] sm:$0xff]
      %v288 = vld [vmem:[#allocation2 + $0x8] sm:$0xff]
      %v289 = vld [vmem:[%s1] sm:$0xff]
      %v290 = vld [vmem:[%s1 + $0x8] sm:$0xff]
      %v291 = vld [vmem:[%s1 + $0x10] sm:$0xff]
      %v292 = vld [vmem:[%s1 + $0x18] sm:$0xff]
      %v293 = vld [vmem:[%s1 + $0x20] sm:$0xff]
      %v294 = vld [vmem:[%s1 + $0x28] sm:$0xff]
      %v295 = vld [vmem:[%s1 + $0x30] sm:$0xff]
      %v296 = vld [vmem:[%s1 + $0x38] sm:$0xff]
      %v297 = vld [vmem:[#allocation2 + $0x1] sm:$0xff]
      %v298 = vld [vmem:[#allocation2 + $0x9] sm:$0xff]
      %s299 = scalar_lea.vmem %s1, 64
      %v300 = vld [vmem:[%s299] sm:$0xff]
      %v301 = vld [vmem:[%s299 + $0x8] sm:$0xff]
      %v302 = vld [vmem:[%s299 + $0x10] sm:$0xff]
      %v303 = vld [vmem:[%s299 + $0x18] sm:$0xff]
      %v304 = vld [vmem:[%s299 + $0x20] sm:$0xff]
      %v305 = vld [vmem:[%s299 + $0x28] sm:$0xff]
      %v306 = vld [vmem:[%s299 + $0x30] sm:$0xff]
      %v307 = vld [vmem:[%s299 + $0x38] sm:$0xff]
      %v309 = vsel %vm284, %v297, 0
      %v312 = vsel %vm284, %v298, 0
      %314 = vmatprep.subr.mxu0 0.0
      %315 = vmatpush1.msra.mxu0 %v300
      %316 = vmatprep.subr.mxu0 0.0
      %317 = vmatpush1.msra.mxu0 %v301
      %318 = vmatprep.subr.mxu0 0.0
      %319 = vmatpush1.msra.mxu0 %v302
      %320 = vmatprep.subr.mxu0 0.0
      %321 = vmatpush1.msra.mxu0 %v303
      %322 = vmatprep.subr.mxu0 0.0
      %323 = vmatpush1.msra.mxu0 %v304
      %324 = vmatprep.subr.mxu0 0.0
      %325 = vmatpush1.msra.mxu0 %v305
      %326 = vmatprep.subr.mxu0 0.0
      %327 = vmatpush1.msra.mxu0 %v306
      %328 = vmatprep.subr.mxu0 0.0
      %329 = vmatpush1.msra.mxu0 %v307
      %330 = vmatprep.subr.mxu0 0.0
      %331 = vmatpush1.msra.mxu0 0.0
      %332 = vmatprep.subr.mxu0 0.0
      %333 = vmatpush1.msra.mxu0 0.0
      %334 = vmatprep.subr.mxu0 0.0
      %335 = vmatpush1.msra.mxu0 0.0
      %336 = vmatprep.subr.mxu0 0.0
      %337 = vmatpush1.msra.mxu0 0.0
      %338 = vmatprep.subr.mxu0 0.0
      %339 = vmatpush1.msra.mxu0 0.0
      %340 = vmatprep.subr.mxu0 0.0
      %341 = vmatpush1.msra.mxu0 0.0
      %342 = vmatprep.subr.mxu0 0.0
      %343 = vmatpush1.msra.mxu0 0.0
      %344 = vmatprep.subr.mxu0 0.0
      %345 = vmatpush1.msra.mxu0 0.0
      %346 = vmatprep.subr.mxu0 0.0
      %347 = vmatpush1.msra.mxu0 0.0
      %348 = vmatprep.subr.mxu0 0.0
      %349 = vmatpush1.msra.mxu0 0.0
      %350 = vmatprep.subr.mxu0 0.0
      %351 = vmatpush1.msra.mxu0 0.0
      %352 = vmatprep.subr.mxu0 0.0
      %353 = vmatpush1.msra.mxu0 0.0
      %354 = vmatprep.subr.mxu0 0.0
      %355 = vmatpush1.msra.mxu0 0.0
      %356 = vmatprep.subr.mxu0 0.0
      %357 = vmatpush1.msra.mxu0 0.0
      %358 = vmatprep.subr.mxu0 0.0
      %359 = vmatpush1.msra.mxu0 0.0
      %360 = vmatprep.subr.mxu0 0.0
      %361 = vmatpush1.msra.mxu0 0.0
      %362 = vmatprep.subr.mxu0 0.0
      %363 = vmatpush1.msra.mxu0 0.0
      %364 = vmatprep.subr.mxu0 0.0
      %365 = vmatpush1.msra.mxu0 0.0
      %366 = vmatprep.subr.mxu0 0.0
      %367 = vmatpush1.msra.mxu0 0.0
      %368 = vmatprep.subr.mxu0 0.0
      %369 = vmatpush1.msra.mxu0 0.0
      %370 = vmatprep.subr.mxu0 0.0
      %371 = vmatpush1.msra.mxu0 0.0
      %372 = vmatprep.subr.mxu0 0.0
      %373 = vmatpush1.msra.mxu0 0.0
      %374 = vmatprep.subr.mxu0 0.0
      %375 = vmatpush1.msra.mxu0 0.0
      %376 = vmatprep.subr.mxu0 0.0
      %377 = vmatpush1.msra.mxu0 0.0
      %378 = vmatprep.mubr.f32.mxu0 0.0
      %379 = vmatmul.mubr.f32.gmra.mrb[0].mxu0 %v309
      %v380 = vpop.f32.mrb[0].mxu0
      %v381 = vadd.f32 0.0, %v380
      %v382 = vpop.f32.mrb[0].mxu0
      %383 = vmatprep.mubr.f32.mxu0 0.0
      %384 = vmatmul.mubr.f32.gmra.mrb[0].mxu0 %v312
      %v385 = vpop.f32.mrb[0].mxu0
      %v386 = vadd.f32 0.0, %v385
      %v387 = vpop.f32.mrb[0].mxu0
      %388 = vdwg.mxu0
      %v390 = vsel %vm284, %v287, 0
      %v393 = vsel %vm284, %v288, 0
      %395 = vmatprep.subr.mxu0 0.0
      %396 = vmatpush1.msra.mxu0 %v289
      %397 = vmatprep.subr.mxu0 0.0
      %398 = vmatpush1.msra.mxu0 %v290
      %399 = vmatprep.subr.mxu0 0.0
      %400 = vmatpush1.msra.mxu0 %v291
      %401 = vmatprep.subr.mxu0 0.0
      %402 = vmatpush1.msra.mxu0 %v292
      %403 = vmatprep.subr.mxu0 0.0
      %404 = vmatpush1.msra.mxu0 %v293
      %405 = vmatprep.subr.mxu0 0.0
      %406 = vmatpush1.msra.mxu0 %v294
      %407 = vmatprep.subr.mxu0 0.0
      %408 = vmatpush1.msra.mxu0 %v295
      %409 = vmatprep.subr.mxu0 0.0
      %410 = vmatpush1.msra.mxu0 %v296
      %411 = vmatprep.subr.mxu0 0.0
      %412 = vmatpush1.msra.mxu0 0.0
      %413 = vmatprep.subr.mxu0 0.0
      %414 = vmatpush1.msra.mxu0 0.0
      %415 = vmatprep.subr.mxu0 0.0
      %416 = vmatpush1.msra.mxu0 0.0
      %417 = vmatprep.subr.mxu0 0.0
      %418 = vmatpush1.msra.mxu0 0.0
      %419 = vmatprep.subr.mxu0 0.0
      %420 = vmatpush1.msra.mxu0 0.0
      %421 = vmatprep.subr.mxu0 0.0
      %422 = vmatpush1.msra.mxu0 0.0
      %423 = vmatprep.subr.mxu0 0.0
      %424 = vmatpush1.msra.mxu0 0.0
      %425 = vmatprep.subr.mxu0 0.0
      %426 = vmatpush1.msra.mxu0 0.0
      %427 = vmatprep.subr.mxu0 0.0
      %428 = vmatpush1.msra.mxu0 0.0
      %429 = vmatprep.subr.mxu0 0.0
      %430 = vmatpush1.msra.mxu0 0.0
      %431 = vmatprep.subr.mxu0 0.0
      %432 = vmatpush1.msra.mxu0 0.0
      %433 = vmatprep.subr.mxu0 0.0
      %434 = vmatpush1.msra.mxu0 0.0
      %435 = vmatprep.subr.mxu0 0.0
      %436 = vmatpush1.msra.mxu0 0.0
      %437 = vmatprep.subr.mxu0 0.0
      %438 = vmatpush1.msra.mxu0 0.0
      %439 = vmatprep.subr.mxu0 0.0
      %440 = vmatpush1.msra.mxu0 0.0
      %441 = vmatprep.subr.mxu0 0.0
      %442 = vmatpush1.msra.mxu0 0.0
      %443 = vmatprep.subr.mxu0 0.0
      %444 = vmatpush1.msra.mxu0 0.0
      %445 = vmatprep.subr.mxu0 0.0
      %446 = vmatpush1.msra.mxu0 0.0
      %447 = vmatprep.subr.mxu0 0.0
      %448 = vmatpush1.msra.mxu0 0.0
      %449 = vmatprep.subr.mxu0 0.0
      %450 = vmatpush1.msra.mxu0 0.0
      %451 = vmatprep.subr.mxu0 0.0
      %452 = vmatpush1.msra.mxu0 0.0
      %453 = vmatprep.subr.mxu0 0.0
      %454 = vmatpush1.msra.mxu0 0.0
      %455 = vmatprep.subr.mxu0 0.0
      %456 = vmatpush1.msra.mxu0 0.0
      %457 = vmatprep.subr.mxu0 0.0
      %458 = vmatpush1.msra.mxu0 0.0
      %459 = vmatprep.mubr.f32.mxu0 0.0
      %460 = vmatmul.mubr.f32.gmra.mrb[0].mxu0 %v390
      %v461 = vpop.f32.mrb[0].mxu0
      %v462 = vadd.f32 %v381, %v461
      %v463 = vpop.f32.mrb[0].mxu0
      %464 = vmatprep.mubr.f32.mxu0 0.0
      %465 = vmatmul.mubr.f32.gmra.mrb[0].mxu0 %v393
      %v466 = vpop.f32.mrb[0].mxu0
      %v467 = vadd.f32 %v386, %v466
      %v468 = vpop.f32.mrb[0].mxu0
      %469 = vdwg.mxu0
      %v470 = vld [vmem:[#allocation2 + $0x2] sm:$0xff]
      %v471 = vld [vmem:[#allocation2 + $0xa] sm:$0xff]
      %s472 = scalar_lea.vmem %s1, 128
      %v473 = vld [vmem:[%s472] sm:$0xff]
      %v474 = vld [vmem:[%s472 + $0x8] sm:$0xff]
      %v475 = vld [vmem:[%s472 + $0x10] sm:$0xff]
      %v476 = vld [vmem:[%s472 + $0x18] sm:$0xff]
      %v477 = vld [vmem:[%s472 + $0x20] sm:$0xff]
      %v478 = vld [vmem:[%s472 + $0x28] sm:$0xff]
      %v479 = vld [vmem:[%s472 + $0x30] sm:$0xff]
      %v480 = vld [vmem:[%s472 + $0x38] sm:$0xff]
      %v482 = vsel %vm284, %v470, 0
      %v485 = vsel %vm284, %v471, 0
      %487 = vmatprep.subr.mxu0 0.0
      %488 = vmatpush1.msra.mxu0 %v473
      %489 = vmatprep.subr.mxu0 0.0
      %490 = vmatpush1.msra.mxu0 %v474
      %491 = vmatprep.subr.mxu0 0.0
      %492 = vmatpush1.msra.mxu0 %v475
      %493 = vmatprep.subr.mxu0 0.0
      %494 = vmatpush1.msra.mxu0 %v476
      %495 = vmatprep.subr.mxu0 0.0
      %496 = vmatpush1.msra.mxu0 %v477
      %497 = vmatprep.subr.mxu0 0.0
      %498 = vmatpush1.msra.mxu0 %v478
      %499 = vmatprep.subr.mxu0 0.0
      %500 = vmatpush1.msra.mxu0 %v479
      %501 = vmatprep.subr.mxu0 0.0
      %502 = vmatpush1.msra.mxu0 %v480
      %503 = vmatprep.subr.mxu0 0.0
      %504 = vmatpush1.msra.mxu0 0.0
      %505 = vmatprep.subr.mxu0 0.0
      %506 = vmatpush1.msra.mxu0 0.0
      %507 = vmatprep.subr.mxu0 0.0
      %508 = vmatpush1.msra.mxu0 0.0
      %509 = vmatprep.subr.mxu0 0.0
      %510 = vmatpush1.msra.mxu0 0.0
      %511 = vmatprep.subr.mxu0 0.0
      %512 = vmatpush1.msra.mxu0 0.0
      %513 = vmatprep.subr.mxu0 0.0
      %514 = vmatpush1.msra.mxu0 0.0
      %515 = vmatprep.subr.mxu0 0.0
      %516 = vmatpush1.msra.mxu0 0.0
      %517 = vmatprep.subr.mxu0 0.0
      %518 = vmatpush1.msra.mxu0 0.0
      %519 = vmatprep.subr.mxu0 0.0
      %520 = vmatpush1.msra.mxu0 0.0
      %521 = vmatprep.subr.mxu0 0.0
      %522 = vmatpush1.msra.mxu0 0.0
      %523 = vmatprep.subr.mxu0 0.0
      %524 = vmatpush1.msra.mxu0 0.0
      %525 = vmatprep.subr.mxu0 0.0
      %526 = vmatpush1.msra.mxu0 0.0
      %527 = vmatprep.subr.mxu0 0.0
      %528 = vmatpush1.msra.mxu0 0.0
      %529 = vmatprep.subr.mxu0 0.0
      %530 = vmatpush1.msra.mxu0 0.0
      %531 = vmatprep.subr.mxu0 0.0
      %532 = vmatpush1.msra.mxu0 0.0
      %533 = vmatprep.subr.mxu0 0.0
      %534 = vmatpush1.msra.mxu0 0.0
      %535 = vmatprep.subr.mxu0 0.0
      %536 = vmatpush1.msra.mxu0 0.0
      %537 = vmatprep.subr.mxu0 0.0
      %538 = vmatpush1.msra.mxu0 0.0
      %539 = vmatprep.subr.mxu0 0.0
      %540 = vmatpush1.msra.mxu0 0.0
      %541 = vmatprep.subr.mxu0 0.0
      %542 = vmatpush1.msra.mxu0 0.0
      %543 = vmatprep.subr.mxu0 0.0
      %544 = vmatpush1.msra.mxu0 0.0
      %545 = vmatprep.subr.mxu0 0.0
      %546 = vmatpush1.msra.mxu0 0.0
      %547 = vmatprep.subr.mxu0 0.0
      %548 = vmatpush1.msra.mxu0 0.0
      %549 = vmatprep.subr.mxu0 0.0
      %550 = vmatpush1.msra.mxu0 0.0
      %551 = vmatprep.mubr.f32.mxu0 0.0
      %552 = vmatmul.mubr.f32.gmra.mrb[0].mxu0 %v482
      %v553 = vpop.f32.mrb[0].mxu0
      %v554 = vadd.f32 0.0, %v553
      %v555 = vpop.f32.mrb[0].mxu0
      %556 = vmatprep.mubr.f32.mxu0 0.0
      %557 = vmatmul.mubr.f32.gmra.mrb[0].mxu0 %v485
      %v558 = vpop.f32.mrb[0].mxu0
      %v559 = vadd.f32 0.0, %v558
      %v560 = vpop.f32.mrb[0].mxu0
      %561 = vdwg.mxu0
      %v562 = vadd.f32 %v462, %v554
      %v563 = vadd.f32 %v467, %v559
      %v564 = vld [vmem:[%s2] sm:$0x1]
      %v566 = vlaneseq
      %v567 = vshrl.u32 %v566, 7
      %v568 = vsub.s32 0, %v567
      %v569 = vrot.slane %v564, %v568
      %v571 = vmul.f32 %v562, %v569
      %v572 = vmul.f32 %v563, %v569
      %v573 = vld [vmem:[%s3] sm:$0x1]
      %v575 = vlaneseq
      %v576 = vshrl.u32 %v575, 7
      %v577 = vsub.s32 0, %v576
      %v578 = vrot.slane %v573, %v577
      %v580 = vadd.f32 %v571, %v578
      %v581 = vadd.f32 %v572, %v578
      %v582 = vmax.f32 %v580, 0.0
      %v583 = vmax.f32 %v581, 0.0
      %584 = vst [vmem:[#allocation3] sm:$0x1] 0.0
      %585 = vst [vmem:[#allocation3 + $0x11] sm:$0x1] 0.0
      %586 = vst [vmem:[#allocation3 + $0x1] sm:$0xff] %v582
      %587 = vst [vmem:[#allocation3 + $0x9] sm:$0xff] %v583
      %v588 = vld [vmem:[#allocation3] sm:$0xff]
      %v589 = vld [vmem:[#allocation3 + $0x8] sm:$0xff]
      %v590 = vld [vmem:[%s4] sm:$0xff]
      %v591 = vld [vmem:[%s4 + $0x8] sm:$0xff]
      %v592 = vld [vmem:[%s4 + $0x10] sm:$0xff]
      %v593 = vld [vmem:[%s4 + $0x18] sm:$0xff]
      %v594 = vld [vmem:[%s4 + $0x20] sm:$0xff]
      %v595 = vld [vmem:[%s4 + $0x28] sm:$0xff]
      %v596 = vld [vmem:[%s4 + $0x30] sm:$0xff]
      %v597 = vld [vmem:[%s4 + $0x38] sm:$0xff]
      %v598 = vld [vmem:[%s4 + $0x40] sm:$0xff]
      %v599 = vld [vmem:[%s4 + $0x48] sm:$0xff]
      %v600 = vld [vmem:[%s4 + $0x50] sm:$0xff]
      %v601 = vld [vmem:[%s4 + $0x58] sm:$0xff]
      %v602 = vld [vmem:[%s4 + $0x60] sm:$0xff]
      %v603 = vld [vmem:[%s4 + $0x68] sm:$0xff]
      %v604 = vld [vmem:[%s4 + $0x70] sm:$0xff]
      %v605 = vld [vmem:[%s4 + $0x78] sm:$0xff]
      %v606 = vld [vmem:[#allocation3 + $0x1] sm:$0xff]
      %v607 = vld [vmem:[#allocation3 + $0x9] sm:$0xff]
      %s608 = scalar_lea.vmem %s4, 128
      %v609 = vld [vmem:[%s608] sm:$0xff]
      %v610 = vld [vmem:[%s608 + $0x8] sm:$0xff]
      %v611 = vld [vmem:[%s608 + $0x10] sm:$0xff]
      %v612 = vld [vmem:[%s608 + $0x18] sm:$0xff]
      %v613 = vld [vmem:[%s608 + $0x20] sm:$0xff]
      %v614 = vld [vmem:[%s608 + $0x28] sm:$0xff]
      %v615 = vld [vmem:[%s608 + $0x30] sm:$0xff]
      %v616 = vld [vmem:[%s608 + $0x38] sm:$0xff]
      %v617 = vld [vmem:[%s608 + $0x40] sm:$0xff]
      %v618 = vld [vmem:[%s608 + $0x48] sm:$0xff]
      %v619 = vld [vmem:[%s608 + $0x50] sm:$0xff]
      %v620 = vld [vmem:[%s608 + $0x58] sm:$0xff]
      %v621 = vld [vmem:[%s608 + $0x60] sm:$0xff]
      %v622 = vld [vmem:[%s608 + $0x68] sm:$0xff]
      %v623 = vld [vmem:[%s608 + $0x70] sm:$0xff]
      %v624 = vld [vmem:[%s608 + $0x78] sm:$0xff]
      %625 = vmatprep.subr.mxu0 0.0
      %626 = vmatpush1.msra.mxu0 %v609
      %627 = vmatprep.subr.mxu0 0.0
      %628 = vmatpush1.msra.mxu0 %v610
      %629 = vmatprep.subr.mxu0 0.0
      %630 = vmatpush1.msra.mxu0 %v611
      %631 = vmatprep.subr.mxu0 0.0
      %632 = vmatpush1.msra.mxu0 %v612
      %633 = vmatprep.subr.mxu0 0.0
      %634 = vmatpush1.msra.mxu0 %v613
      %635 = vmatprep.subr.mxu0 0.0
      %636 = vmatpush1.msra.mxu0 %v614
      %637 = vmatprep.subr.mxu0 0.0
      %638 = vmatpush1.msra.mxu0 %v615
      %639 = vmatprep.subr.mxu0 0.0
      %640 = vmatpush1.msra.mxu0 %v616
      %641 = vmatprep.subr.mxu0 0.0
      %642 = vmatpush1.msra.mxu0 %v617
      %643 = vmatprep.subr.mxu0 0.0
      %644 = vmatpush1.msra.mxu0 %v618
      %645 = vmatprep.subr.mxu0 0.0
      %646 = vmatpush1.msra.mxu0 %v619
      %647 = vmatprep.subr.mxu0 0.0
      %648 = vmatpush1.msra.mxu0 %v620
      %649 = vmatprep.subr.mxu0 0.0
      %650 = vmatpush1.msra.mxu0 %v621
      %651 = vmatprep.subr.mxu0 0.0
      %652 = vmatpush1.msra.mxu0 %v622
      %653 = vmatprep.subr.mxu0 0.0
      %654 = vmatpush1.msra.mxu0 %v623
      %655 = vmatprep.subr.mxu0 0.0
      %656 = vmatpush1.msra.mxu0 %v624
      %657 = vmatprep.subr.mxu0 0.0
      %658 = vmatpush1.msra.mxu0 0.0
      %659 = vmatprep.subr.mxu0 0.0
      %660 = vmatpush1.msra.mxu0 0.0
      %661 = vmatprep.subr.mxu0 0.0
      %662 = vmatpush1.msra.mxu0 0.0
      %663 = vmatprep.subr.mxu0 0.0
      %664 = vmatpush1.msra.mxu0 0.0
      %665 = vmatprep.subr.mxu0 0.0
      %666 = vmatpush1.msra.mxu0 0.0
      %667 = vmatprep.subr.mxu0 0.0
      %668 = vmatpush1.msra.mxu0 0.0
      %669 = vmatprep.subr.mxu0 0.0
      %670 = vmatpush1.msra.mxu0 0.0
      %671 = vmatprep.subr.mxu0 0.0
      %672 = vmatpush1.msra.mxu0 0.0
      %673 = vmatprep.subr.mxu0 0.0
      %674 = vmatpush1.msra.mxu0 0.0
      %675 = vmatprep.subr.mxu0 0.0
      %676 = vmatpush1.msra.mxu0 0.0
      %677 = vmatprep.subr.mxu0 0.0
      %678 = vmatpush1.msra.mxu0 0.0
      %679 = vmatprep.subr.mxu0 0.0
      %680 = vmatpush1.msra.mxu0 0.0
      %681 = vmatprep.subr.mxu0 0.0
      %682 = vmatpush1.msra.mxu0 0.0
      %683 = vmatprep.subr.mxu0 0.0
      %684 = vmatpush1.msra.mxu0 0.0
      %685 = vmatprep.subr.mxu0 0.0
      %686 = vmatpush1.msra.mxu0 0.0
      %687 = vmatprep.subr.mxu0 0.0
      %688 = vmatpush1.msra.mxu0 0.0
      %689 = vmatprep.mubr.f32.mxu0 0.0
      %690 = vmatmul.mubr.f32.gmra.mrb[0].mxu0 %v606
      %v691 = vpop.f32.mrb[0].mxu0
      %v692 = vadd.f32 0.0, %v691
      %v693 = vpop.f32.mrb[0].mxu0
      %694 = vmatprep.mubr.f32.mxu0 0.0
      %695 = vmatmul.mubr.f32.gmra.mrb[0].mxu0 %v607
      %v696 = vpop.f32.mrb[0].mxu0
      %v697 = vadd.f32 0.0, %v696
      %v698 = vpop.f32.mrb[0].mxu0
      %699 = vdwg.mxu0
      %700 = vmatprep.subr.mxu0 0.0
      %701 = vmatpush1.msra.mxu0 %v590
      %702 = vmatprep.subr.mxu0 0.0
      %703 = vmatpush1.msra.mxu0 %v591
      %704 = vmatprep.subr.mxu0 0.0
      %705 = vmatpush1.msra.mxu0 %v592
      %706 = vmatprep.subr.mxu0 0.0
      %707 = vmatpush1.msra.mxu0 %v593
      %708 = vmatprep.subr.mxu0 0.0
      %709 = vmatpush1.msra.mxu0 %v594
      %710 = vmatprep.subr.mxu0 0.0
      %711 = vmatpush1.msra.mxu0 %v595
      %712 = vmatprep.subr.mxu0 0.0
      %713 = vmatpush1.msra.mxu0 %v596
      %714 = vmatprep.subr.mxu0 0.0
      %715 = vmatpush1.msra.mxu0 %v597
      %716 = vmatprep.subr.mxu0 0.0
      %717 = vmatpush1.msra.mxu0 %v598
      %718 = vmatprep.subr.mxu0 0.0
      %719 = vmatpush1.msra.mxu0 %v599
      %720 = vmatprep.subr.mxu0 0.0
      %721 = vmatpush1.msra.mxu0 %v600
      %722 = vmatprep.subr.mxu0 0.0
      %723 = vmatpush1.msra.mxu0 %v601
      %724 = vmatprep.subr.mxu0 0.0
      %725 = vmatpush1.msra.mxu0 %v602
      %726 = vmatprep.subr.mxu0 0.0
      %727 = vmatpush1.msra.mxu0 %v603
      %728 = vmatprep.subr.mxu0 0.0
      %729 = vmatpush1.msra.mxu0 %v604
      %730 = vmatprep.subr.mxu0 0.0
      %731 = vmatpush1.msra.mxu0 %v605
      %732 = vmatprep.subr.mxu0 0.0
      %733 = vmatpush1.msra.mxu0 0.0
      %734 = vmatprep.subr.mxu0 0.0
      %735 = vmatpush1.msra.mxu0 0.0
      %736 = vmatprep.subr.mxu0 0.0
      %737 = vmatpush1.msra.mxu0 0.0
      %738 = vmatprep.subr.mxu0 0.0
      %739 = vmatpush1.msra.mxu0 0.0
      %740 = vmatprep.subr.mxu0 0.0
      %741 = vmatpush1.msra.mxu0 0.0
      %742 = vmatprep.subr.mxu0 0.0
      %743 = vmatpush1.msra.mxu0 0.0
      %744 = vmatprep.subr.mxu0 0.0
      %745 = vmatpush1.msra.mxu0 0.0
      %746 = vmatprep.subr.mxu0 0.0
      %747 = vmatpush1.msra.mxu0 0.0
      %748 = vmatprep.subr.mxu0 0.0
      %749 = vmatpush1.msra.mxu0 0.0
      %750 = vmatprep.subr.mxu0 0.0
      %751 = vmatpush1.msra.mxu0 0.0
      %752 = vmatprep.subr.mxu0 0.0
      %753 = vmatpush1.msra.mxu0 0.0
      %754 = vmatprep.subr.mxu0 0.0
      %755 = vmatpush1.msra.mxu0 0.0
      %756 = vmatprep.subr.mxu0 0.0
      %757 = vmatpush1.msra.mxu0 0.0
      %758 = vmatprep.subr.mxu0 0.0
      %759 = vmatpush1.msra.mxu0 0.0
      %760 = vmatprep.subr.mxu0 0.0
      %761 = vmatpush1.msra.mxu0 0.0
      %762 = vmatprep.subr.mxu0 0.0
      %763 = vmatpush1.msra.mxu0 0.0
      %764 = vmatprep.mubr.f32.mxu0 0.0
      %765 = vmatmul.mubr.f32.gmra.mrb[0].mxu0 %v588
      %v766 = vpop.f32.mrb[0].mxu0
      %v767 = vadd.f32 %v692, %v766
      %v768 = vpop.f32.mrb[0].mxu0
      %769 = vmatprep.mubr.f32.mxu0 0.0
      %770 = vmatmul.mubr.f32.gmra.mrb[0].mxu0 %v589
      %v771 = vpop.f32.mrb[0].mxu0
      %v772 = vadd.f32 %v697, %v771
      %v773 = vpop.f32.mrb[0].mxu0
      %774 = vdwg.mxu0
      %v775 = vld [vmem:[#allocation3 + $0x2] sm:$0xff]
      %v776 = vld [vmem:[#allocation3 + $0xa] sm:$0xff]
      %s777 = scalar_lea.vmem %s4, 256
      %v778 = vld [vmem:[%s777] sm:$0xff]
      %v779 = vld [vmem:[%s777 + $0x8] sm:$0xff]
      %v780 = vld [vmem:[%s777 + $0x10] sm:$0xff]
      %v781 = vld [vmem:[%s777 + $0x18] sm:$0xff]
      %v782 = vld [vmem:[%s777 + $0x20] sm:$0xff]
      %v783 = vld [vmem:[%s777 + $0x28] sm:$0xff]
      %v784 = vld [vmem:[%s777 + $0x30] sm:$0xff]
      %v785 = vld [vmem:[%s777 + $0x38] sm:$0xff]
      %v786 = vld [vmem:[%s777 + $0x40] sm:$0xff]
      %v787 = vld [vmem:[%s777 + $0x48] sm:$0xff]
      %v788 = vld [vmem:[%s777 + $0x50] sm:$0xff]
      %v789 = vld [vmem:[%s777 + $0x58] sm:$0xff]
      %v790 = vld [vmem:[%s777 + $0x60] sm:$0xff]
      %v791 = vld [vmem:[%s777 + $0x68] sm:$0xff]
      %v792 = vld [vmem:[%s777 + $0x70] sm:$0xff]
      %v793 = vld [vmem:[%s777 + $0x78] sm:$0xff]
      %794 = vmatprep.subr.mxu0 0.0
      %795 = vmatpush1.msra.mxu0 %v778
      %796 = vmatprep.subr.mxu0 0.0
      %797 = vmatpush1.msra.mxu0 %v779
      %798 = vmatprep.subr.mxu0 0.0
      %799 = vmatpush1.msra.mxu0 %v780
      %800 = vmatprep.subr.mxu0 0.0
      %801 = vmatpush1.msra.mxu0 %v781
      %802 = vmatprep.subr.mxu0 0.0
      %803 = vmatpush1.msra.mxu0 %v782
      %804 = vmatprep.subr.mxu0 0.0
      %805 = vmatpush1.msra.mxu0 %v783
      %806 = vmatprep.subr.mxu0 0.0
      %807 = vmatpush1.msra.mxu0 %v784
      %808 = vmatprep.subr.mxu0 0.0
      %809 = vmatpush1.msra.mxu0 %v785
      %810 = vmatprep.subr.mxu0 0.0
      %811 = vmatpush1.msra.mxu0 %v786
      %812 = vmatprep.subr.mxu0 0.0
      %813 = vmatpush1.msra.mxu0 %v787
      %814 = vmatprep.subr.mxu0 0.0
      %815 = vmatpush1.msra.mxu0 %v788
      %816 = vmatprep.subr.mxu0 0.0
      %817 = vmatpush1.msra.mxu0 %v789
      %818 = vmatprep.subr.mxu0 0.0
      %819 = vmatpush1.msra.mxu0 %v790
      %820 = vmatprep.subr.mxu0 0.0
      %821 = vmatpush1.msra.mxu0 %v791
      %822 = vmatprep.subr.mxu0 0.0
      %823 = vmatpush1.msra.mxu0 %v792
      %824 = vmatprep.subr.mxu0 0.0
      %825 = vmatpush1.msra.mxu0 %v793
      %826 = vmatprep.subr.mxu0 0.0
      %827 = vmatpush1.msra.mxu0 0.0
      %828 = vmatprep.subr.mxu0 0.0
      %829 = vmatpush1.msra.mxu0 0.0
      %830 = vmatprep.subr.mxu0 0.0
      %831 = vmatpush1.msra.mxu0 0.0
      %832 = vmatprep.subr.mxu0 0.0
      %833 = vmatpush1.msra.mxu0 0.0
      %834 = vmatprep.subr.mxu0 0.0
      %835 = vmatpush1.msra.mxu0 0.0
      %836 = vmatprep.subr.mxu0 0.0
      %837 = vmatpush1.msra.mxu0 0.0
      %838 = vmatprep.subr.mxu0 0.0
      %839 = vmatpush1.msra.mxu0 0.0
      %840 = vmatprep.subr.mxu0 0.0
      %841 = vmatpush1.msra.mxu0 0.0
      %842 = vmatprep.subr.mxu0 0.0
      %843 = vmatpush1.msra.mxu0 0.0
      %844 = vmatprep.subr.mxu0 0.0
      %845 = vmatpush1.msra.mxu0 0.0
      %846 = vmatprep.subr.mxu0 0.0
      %847 = vmatpush1.msra.mxu0 0.0
      %848 = vmatprep.subr.mxu0 0.0
      %849 = vmatpush1.msra.mxu0 0.0
      %850 = vmatprep.subr.mxu0 0.0
      %851 = vmatpush1.msra.mxu0 0.0
      %852 = vmatprep.subr.mxu0 0.0
      %853 = vmatpush1.msra.mxu0 0.0
      %854 = vmatprep.subr.mxu0 0.0
      %855 = vmatpush1.msra.mxu0 0.0
      %856 = vmatprep.subr.mxu0 0.0
      %857 = vmatpush1.msra.mxu0 0.0
      %858 = vmatprep.mubr.f32.mxu0 0.0
      %859 = vmatmul.mubr.f32.gmra.mrb[0].mxu0 %v775
      %v860 = vpop.f32.mrb[0].mxu0
      %v861 = vadd.f32 0.0, %v860
      %v862 = vpop.f32.mrb[0].mxu0
      %863 = vmatprep.mubr.f32.mxu0 0.0
      %864 = vmatmul.mubr.f32.gmra.mrb[0].mxu0 %v776
      %v865 = vpop.f32.mrb[0].mxu0
      %v866 = vadd.f32 0.0, %v865
      %v867 = vpop.f32.mrb[0].mxu0
      %868 = vdwg.mxu0
      %v869 = vadd.f32 %v767, %v861
      %v870 = vadd.f32 %v772, %v866
      %v871 = vld [vmem:[%s5] sm:$0x1]
      %v873 = vlaneseq
      %v874 = vshrl.u32 %v873, 7
      %v875 = vsub.s32 0, %v874
      %v876 = vrot.slane %v871, %v875
      %v878 = vmul.f32 %v869, %v876
      %v879 = vmul.f32 %v870, %v876
      %v880 = vld [vmem:[%s6] sm:$0x1]
      %v882 = vlaneseq
      %v883 = vshrl.u32 %v882, 7
      %v884 = vsub.s32 0, %v883
      %v885 = vrot.slane %v880, %v884
      %v887 = vadd.f32 %v878, %v885
      %v888 = vadd.f32 %v879, %v885
      %v889 = vmax.f32 %v887, 0.0
      %v890 = vmax.f32 %v888, 0.0
      %891 = vst [vmem:[%s278] sm:$0xff] %v889
      %892 = vst [vmem:[%s278 + $0x8] sm:$0xff] %v890
      %p893 = scmp.lt.s32.totalorder %s18, 1
      %s894 = scalar_select %p893, %s18, 1
      %s895 = smul.addr %s894, 2
      %s896 = smul.addr %s895, 8
      %s897 = scalar_lea.vmem %s7, %s896
      // Predicated region
      $region49: #{bottleneck2conv_forward.1} parent=47 // pred_check
        %p898 = pneg %p188
      $region50: #{bottleneck2conv_forward.1} parent=47 // pred_check_branch
        %900 = sbr.rel (%p898) target = $region52
      $region51: #{bottleneck2conv_forward.1} parent=47 // pred_region
        _
      $region52: #{bottleneck2conv_forward.1} parent=47 // pred_fallthru
        _
    $region48: #{bottleneck2conv_forward.1} parent=5 // pred_fallthru
      _
    %p901 = scmp.le.s32.totalorder 2, %s13
    // Predicated region
    $region53: #{bottleneck2conv_forward.1} parent=5 // pred_check
      %p902 = pneg %p901
    $region54: #{bottleneck2conv_forward.1} parent=5 // pred_check_branch
      %904 = sbr.rel (%p902) target = $region56
    $region55: #{bottleneck2conv_forward.1} parent=5 // pred_region
      %s905 = ssub.s32 %s13, 2
      // Predicated region
      $region57: #{bottleneck2conv_forward.1} parent=55 // pred_check
        %p906 = pneg %p194
      $region58: #{bottleneck2conv_forward.1} parent=55 // pred_check_branch
        %908 = sbr.rel (%p906) target = $region60
      $region59: #{bottleneck2conv_forward.1} parent=55 // pred_region
        %p909 = scmp.lt.s32.totalorder %s19, 1
        %s910 = scalar_select %p909, %s19, 1
        %s911 = smul.addr %s910, 2
        %s912 = smul.addr %s911, 8
        %s913 = scalar_lea.vmem %s7, %s912
      $region60: #{bottleneck2conv_forward.1} parent=55 // pred_fallthru
        _
    $region56: #{bottleneck2conv_forward.1} parent=5 // pred_fallthru
      _
  $region6: #{bottleneck2conv_forward.1} parent=0 // loop_footer
    %s17 = sadd.s32 1, %s13
  $region7: #{bottleneck2conv_forward.1} parent=0 // loop_footer_branch
    %12 = sbr.rel target = $region3
  $region8: #{bottleneck2conv_forward.1} parent=0 // loop_exit
    _

</llo_original>
